<compile_context>
chip_gen: v7x
topology: tpu7x:2x2x1
jax: 0.10.0
libtpu: 0.0.40
codegen_flags: <defaults>
</compile_context>

<pallas_src>
import jax
import jax.numpy as jnp
from jax.experimental import pallas as pl
from jax.experimental.pallas import tpu as pltpu


def _round_up(x, m):
    return ((x + m - 1) // m) * m


def ae_kernel(x_ref,
              w1_ref, b1_ref, w2_ref, b2_ref, w3_ref, b3_ref,
              w4_ref, b4_ref, w5_ref, b5_ref, w6_ref, b6_ref,
              o_ref):
    """Fused encoder+decoder for one batch tile. All weights live fully in VMEM."""
    x = x_ref[...]
    if x.dtype != jnp.float32:           # real cast only on the bf16 I/O path
        x = x.astype(jnp.float32)

    # encoder: Linear(D,32) -> ReLU -> Linear(32,16) -> ReLU -> Linear(16,L) -> ReLU
    h = jnp.dot(x, w1_ref[...], preferred_element_type=jnp.float32) + b1_ref[...]
    h = jnp.maximum(h, 0.0)
    h = jnp.dot(h, w2_ref[...], preferred_element_type=jnp.float32) + b2_ref[...]
    h = jnp.maximum(h, 0.0)
    h = jnp.dot(h, w3_ref[...], preferred_element_type=jnp.float32) + b3_ref[...]
    h = jnp.maximum(h, 0.0)

    # decoder: Linear(L,16) -> ReLU -> Linear(16,32) -> ReLU -> Linear(32,D) -> Sigmoid
    h = jnp.dot(h, w4_ref[...], preferred_element_type=jnp.float32) + b4_ref[...]
    h = jnp.maximum(h, 0.0)
    h = jnp.dot(h, w5_ref[...], preferred_element_type=jnp.float32) + b5_ref[...]
    h = jnp.maximum(h, 0.0)
    h = jnp.dot(h, w6_ref[...], preferred_element_type=jnp.float32) + b6_ref[...]

    # sigmoid: exp on EUP, reciprocal on EUP (approx) instead of a VALU divide
    y = pl.reciprocal(1.0 + jnp.exp(-h), approx=True)
    o_ref[...] = y.astype(o_ref.dtype)


def ae_forward(features, params, *, tile_m=512, out_dtype=None):
    """features: (N, D) f32 or bf16.  params: dict from init_ae_params.
    Returns (N, D) in out_dtype (default: features.dtype)."""
    N, D = features.shape
    out_dtype = out_dtype if out_dtype is not None else features.dtype

    # sublane granularity for the I/O dtype (f32 -> 8, bf16 -> 16, int8 -> 32)
    itemsize = jnp.dtype(features.dtype).itemsize
    sub = max(8, 32 // max(1, itemsize))

    # ---- pack two samples per row (lane-dense loads/stores for D=64) --------
    pack = 2 if (N % 2 == 0 and D <= 512) else 1
    xs = features.reshape(N // pack, pack * D) if pack == 2 else features
    rows, width = xs.shape

    def prep(w, b):
        w = w.astype(jnp.float32)
        b = b.astype(jnp.float32)
        if pack == 2:
            z = jnp.zeros_like(w)
            # block_diag(w, w): two samples stay in disjoint lane halves
            w = jnp.concatenate(
                [jnp.concatenate([w, z], axis=1),
                 jnp.concatenate([z, w], axis=1)], axis=0)
            b = jnp.concatenate([b, b], axis=1)
        return w, b

    weight_args = []
    for i in range(1, 7):
        weight_args.extend(prep(params[f"w{i}"], params[f"b{i}"]))

    # ---- batch tiling --------------------------------------------------------
    tile_cap = _round_up(min(max(tile_m, sub), max(rows, sub)), sub)
    n_tiles = pl.cdiv(rows, tile_cap)
    if n_tiles == 1 and rows >= 2 * sub:
        n_tiles = 2                       # let v7x megacore split the batch axis
    tile_rows = _round_up(pl.cdiv(rows, n_tiles), sub)
    n_tiles = pl.cdiv(rows, tile_rows)
    padded_rows = n_tiles * tile_rows
    if padded_rows != rows:               # handle ragged batches by zero-padding
        xs = jnp.pad(xs, ((0, padded_rows - rows), (0, 0)))

    in_specs = [pl.BlockSpec((tile_rows, width), lambda i: (i, 0))]
    # weights/biases: full blocks, grid-invariant index_map -> resident in VMEM
    in_specs += [pl.BlockSpec(a.shape, lambda i: (0, 0)) for a in weight_args]

    out = pl.pallas_call(
        ae_kernel,
        out_shape=jax.ShapeDtypeStruct((padded_rows, width), out_dtype),
        grid_spec=pltpu.PrefetchScalarGridSpec(
            num_scalar_prefetch=0,
            grid=(n_tiles,),
            in_specs=in_specs,
            out_specs=pl.BlockSpec((tile_rows, width), lambda i: (i, 0)),
        ),
        compiler_params=pltpu.CompilerParams(
            dimension_semantics=("parallel",)),
    )(xs, *weight_args)

    out = out[:rows]
    if pack == 2:
        out = out.reshape(N, D)
    return out


def init_ae_params(key, input_dim, latent_dim=8):
    """PyTorch-style uniform(-1/sqrt(fan_in), 1/sqrt(fan_in)) init.
    Weights stored as (in_features, out_features); biases as (1, out_features)."""
    dims = [(input_dim, 32), (32, 16), (16, latent_dim),
            (latent_dim, 16), (16, 32), (32, input_dim)]
    params = {}
    keys = jax.random.split(key, 2 * len(dims))
    for idx, (fan_in, fan_out) in enumerate(dims):
        bound = 1.0 / jnp.sqrt(jnp.float32(fan_in))
        w = jax.random.uniform(keys[2 * idx], (fan_in, fan_out),
                               minval=-bound, maxval=bound, dtype=jnp.float32)
        b = jax.random.uniform(keys[2 * idx + 1], (1, fan_out),
                               minval=-bound, maxval=bound, dtype=jnp.float32)
        params[f"w{idx + 1}"] = w
        params[f"b{idx + 1}"] = b
    return params


def ae_reference(features, params):
    h = features.astype(jnp.float32)
    for i in (1, 2, 3, 4, 5):
        h = jnp.maximum(h @ params[f"w{i}"] + params[f"b{i}"], 0.0)
    h = h @ params["w6"] + params["b6"]
    return jax.nn.sigmoid(h)


if __name__ == "__main__":
    input_dim = 64
    latent_dim = 8
    batch = 32

    key = jax.random.PRNGKey(0)
    k_params, k_x = jax.random.split(key)
    params = init_ae_params(k_params, input_dim, latent_dim)
    features = jax.random.normal(k_x, (batch, input_dim), dtype=jnp.float32)

    # 1) f32, even batch -> packed (2 samples / 128-lane row), grid of 2 tiles.
    out = jax.block_until_ready(ae_forward(features, params))
    ref = ae_reference(features, params)
    assert out.shape == (batch, input_dim)
    assert jnp.allclose(out, ref, atol=2e-3, rtol=1e-3), "f32 packed path mismatch"

    # 2) f32, odd batch -> unpacked fallback path with zero-padded tail tile.
    feat_odd = features[:13]
    out_odd = jax.block_until_ready(ae_forward(feat_odd, params))
    ref_odd = ae_reference(feat_odd, params)
    assert out_odd.shape == (13, input_dim)
    assert jnp.allclose(out_odd, ref_odd, atol=2e-3, rtol=1e-3), "odd-batch path mismatch"

    # 3) bf16 I/O path (inputs & outputs bf16, f32 accumulation inside).
    feat_bf16 = features.astype(jnp.bfloat16)
    out_bf16 = jax.block_until_ready(ae_forward(feat_bf16, params))
    ref_bf16 = ae_reference(feat_bf16.astype(jnp.float32), params)
    assert out_bf16.dtype == jnp.bfloat16
    assert jnp.allclose(out_bf16.astype(jnp.float32), ref_bf16,
                        atol=2e-2, rtol=2e-2), "bf16 path mismatch"

    print("KERNEL_OK")
</pallas_src>

<mosaic_0001>
module attributes {stable_mosaic.version = 11 : i64} {
  func.func @ae_kernel(%arg0: i32, %arg1: memref<8x128xf32, #tpu.memory_space<vmem>>, %arg2: memref<128x64xf32, #tpu.memory_space<vmem>>, %arg3: memref<1x64xf32, #tpu.memory_space<vmem>>, %arg4: memref<64x32xf32, #tpu.memory_space<vmem>>, %arg5: memref<1x32xf32, #tpu.memory_space<vmem>>, %arg6: memref<32x16xf32, #tpu.memory_space<vmem>>, %arg7: memref<1x16xf32, #tpu.memory_space<vmem>>, %arg8: memref<16x32xf32, #tpu.memory_space<vmem>>, %arg9: memref<1x32xf32, #tpu.memory_space<vmem>>, %arg10: memref<32x64xf32, #tpu.memory_space<vmem>>, %arg11: memref<1x64xf32, #tpu.memory_space<vmem>>, %arg12: memref<64x128xf32, #tpu.memory_space<vmem>>, %arg13: memref<1x128xf32, #tpu.memory_space<vmem>>, %arg14: memref<8x128xf32, #tpu.memory_space<vmem>>) attributes {dimension_semantics = [#tpu.dimension_semantics<parallel>], iteration_bounds = array<i64: 2>, scalar_prefetch = 0 : i64, scratch_operands = 0 : i64, tpu.core_type = #tpu.core_type<tc>, window_params = [{transform_indices = @transform_0, window_bounds = array<i64: 8, 128>}, {pipeline_mode = #tpu.pipeline_mode<synchronous>, transform_indices = @transform_1, window_bounds = array<i64: 128, 64>}, {pipeline_mode = #tpu.pipeline_mode<synchronous>, transform_indices = @transform_2, window_bounds = array<i64: 1, 64>}, {pipeline_mode = #tpu.pipeline_mode<synchronous>, transform_indices = @transform_3, window_bounds = array<i64: 64, 32>}, {pipeline_mode = #tpu.pipeline_mode<synchronous>, transform_indices = @transform_4, window_bounds = array<i64: 1, 32>}, {pipeline_mode = #tpu.pipeline_mode<synchronous>, transform_indices = @transform_5, window_bounds = array<i64: 32, 16>}, {pipeline_mode = #tpu.pipeline_mode<synchronous>, transform_indices = @transform_6, window_bounds = array<i64: 1, 16>}, {pipeline_mode = #tpu.pipeline_mode<synchronous>, transform_indices = @transform_7, window_bounds = array<i64: 16, 32>}, {pipeline_mode = #tpu.pipeline_mode<synchronous>, transform_indices = @transform_8, window_bounds = array<i64: 1, 32>}, {pipeline_mode = #tpu.pipeline_mode<synchronous>, transform_indices = @transform_9, window_bounds = array<i64: 32, 64>}, {pipeline_mode = #tpu.pipeline_mode<synchronous>, transform_indices = @transform_10, window_bounds = array<i64: 1, 64>}, {pipeline_mode = #tpu.pipeline_mode<synchronous>, transform_indices = @transform_11, window_bounds = array<i64: 64, 128>}, {pipeline_mode = #tpu.pipeline_mode<synchronous>, transform_indices = @transform_12, window_bounds = array<i64: 1, 128>}, {transform_indices = @transform_13, window_bounds = array<i64: 8, 128>}]} {
    %c0 = arith.constant 0 : index
    %c0_0 = arith.constant 0 : index
    %0 = vector.load %arg1[%c0, %c0_0] : memref<8x128xf32, #tpu.memory_space<vmem>>, vector<8x128xf32>
    %c0_1 = arith.constant 0 : index
    %c0_2 = arith.constant 0 : index
    %1 = vector.load %arg2[%c0_1, %c0_2] : memref<128x64xf32, #tpu.memory_space<vmem>>, vector<128x64xf32>
    %cst = arith.constant dense<0.000000e+00> : vector<8x64xf32>
    %2 = tpu.matmul %0, %1, %cst {dimension_numbers = #tpu.dot_dimension_numbers<[1], [0], [0], [1], [0, 0, 1, 1], [], []>} : vector<8x128xf32>, vector<128x64xf32>, vector<8x64xf32> -> vector<8x64xf32>
    %c0_3 = arith.constant 0 : index
    %c0_4 = arith.constant 0 : index
    %3 = vector.load %arg3[%c0_3, %c0_4] : memref<1x64xf32, #tpu.memory_space<vmem>>, vector<1x64xf32>
    %4 = vector.broadcast %3 : vector<1x64xf32> to vector<8x64xf32>
    %5 = arith.addf %2, %4 : vector<8x64xf32>
    %cst_5 = arith.constant 0.000000e+00 : f32
    %6 = vector.broadcast %cst_5 : f32 to vector<8x64xf32>
    %7 = arith.maximumf %5, %6 : vector<8x64xf32>
    %c0_6 = arith.constant 0 : index
    %c0_7 = arith.constant 0 : index
    %8 = vector.load %arg4[%c0_6, %c0_7] : memref<64x32xf32, #tpu.memory_space<vmem>>, vector<64x32xf32>
    %cst_8 = arith.constant dense<0.000000e+00> : vector<8x32xf32>
    %9 = tpu.matmul %7, %8, %cst_8 {dimension_numbers = #tpu.dot_dimension_numbers<[1], [0], [0], [1], [0, 0, 1, 1], [], []>} : vector<8x64xf32>, vector<64x32xf32>, vector<8x32xf32> -> vector<8x32xf32>
    %c0_9 = arith.constant 0 : index
    %c0_10 = arith.constant 0 : index
    %10 = vector.load %arg5[%c0_9, %c0_10] : memref<1x32xf32, #tpu.memory_space<vmem>>, vector<1x32xf32>
    %11 = vector.broadcast %10 : vector<1x32xf32> to vector<8x32xf32>
    %12 = arith.addf %9, %11 : vector<8x32xf32>
    %cst_11 = arith.constant 0.000000e+00 : f32
    %13 = vector.broadcast %cst_11 : f32 to vector<8x32xf32>
    %14 = arith.maximumf %12, %13 : vector<8x32xf32>
    %c0_12 = arith.constant 0 : index
    %c0_13 = arith.constant 0 : index
    %15 = vector.load %arg6[%c0_12, %c0_13] : memref<32x16xf32, #tpu.memory_space<vmem>>, vector<32x16xf32>
    %cst_14 = arith.constant dense<0.000000e+00> : vector<8x16xf32>
    %16 = tpu.matmul %14, %15, %cst_14 {dimension_numbers = #tpu.dot_dimension_numbers<[1], [0], [0], [1], [0, 0, 1, 1], [], []>} : vector<8x32xf32>, vector<32x16xf32>, vector<8x16xf32> -> vector<8x16xf32>
    %c0_15 = arith.constant 0 : index
    %c0_16 = arith.constant 0 : index
    %17 = vector.load %arg7[%c0_15, %c0_16] : memref<1x16xf32, #tpu.memory_space<vmem>>, vector<1x16xf32>
    %18 = vector.broadcast %17 : vector<1x16xf32> to vector<8x16xf32>
    %19 = arith.addf %16, %18 : vector<8x16xf32>
    %cst_17 = arith.constant 0.000000e+00 : f32
    %20 = vector.broadcast %cst_17 : f32 to vector<8x16xf32>
    %21 = arith.maximumf %19, %20 : vector<8x16xf32>
    %c0_18 = arith.constant 0 : index
    %c0_19 = arith.constant 0 : index
    %22 = vector.load %arg8[%c0_18, %c0_19] : memref<16x32xf32, #tpu.memory_space<vmem>>, vector<16x32xf32>
    %cst_20 = arith.constant dense<0.000000e+00> : vector<8x32xf32>
    %23 = tpu.matmul %21, %22, %cst_20 {dimension_numbers = #tpu.dot_dimension_numbers<[1], [0], [0], [1], [0, 0, 1, 1], [], []>} : vector<8x16xf32>, vector<16x32xf32>, vector<8x32xf32> -> vector<8x32xf32>
    %c0_21 = arith.constant 0 : index
    %c0_22 = arith.constant 0 : index
    %24 = vector.load %arg9[%c0_21, %c0_22] : memref<1x32xf32, #tpu.memory_space<vmem>>, vector<1x32xf32>
    %25 = vector.broadcast %24 : vector<1x32xf32> to vector<8x32xf32>
    %26 = arith.addf %23, %25 : vector<8x32xf32>
    %cst_23 = arith.constant 0.000000e+00 : f32
    %27 = vector.broadcast %cst_23 : f32 to vector<8x32xf32>
    %28 = arith.maximumf %26, %27 : vector<8x32xf32>
    %c0_24 = arith.constant 0 : index
    %c0_25 = arith.constant 0 : index
    %29 = vector.load %arg10[%c0_24, %c0_25] : memref<32x64xf32, #tpu.memory_space<vmem>>, vector<32x64xf32>
    %cst_26 = arith.constant dense<0.000000e+00> : vector<8x64xf32>
    %30 = tpu.matmul %28, %29, %cst_26 {dimension_numbers = #tpu.dot_dimension_numbers<[1], [0], [0], [1], [0, 0, 1, 1], [], []>} : vector<8x32xf32>, vector<32x64xf32>, vector<8x64xf32> -> vector<8x64xf32>
    %c0_27 = arith.constant 0 : index
    %c0_28 = arith.constant 0 : index
    %31 = vector.load %arg11[%c0_27, %c0_28] : memref<1x64xf32, #tpu.memory_space<vmem>>, vector<1x64xf32>
    %32 = vector.broadcast %31 : vector<1x64xf32> to vector<8x64xf32>
    %33 = arith.addf %30, %32 : vector<8x64xf32>
    %cst_29 = arith.constant 0.000000e+00 : f32
    %34 = vector.broadcast %cst_29 : f32 to vector<8x64xf32>
    %35 = arith.maximumf %33, %34 : vector<8x64xf32>
    %c0_30 = arith.constant 0 : index
    %c0_31 = arith.constant 0 : index
    %36 = vector.load %arg12[%c0_30, %c0_31] : memref<64x128xf32, #tpu.memory_space<vmem>>, vector<64x128xf32>
    %cst_32 = arith.constant dense<0.000000e+00> : vector<8x128xf32>
    %37 = tpu.matmul %35, %36, %cst_32 {dimension_numbers = #tpu.dot_dimension_numbers<[1], [0], [0], [1], [0, 0, 1, 1], [], []>} : vector<8x64xf32>, vector<64x128xf32>, vector<8x128xf32> -> vector<8x128xf32>
    %c0_33 = arith.constant 0 : index
    %c0_34 = arith.constant 0 : index
    %38 = vector.load %arg13[%c0_33, %c0_34] : memref<1x128xf32, #tpu.memory_space<vmem>>, vector<1x128xf32>
    %39 = vector.broadcast %38 : vector<1x128xf32> to vector<8x128xf32>
    %40 = arith.addf %37, %39 : vector<8x128xf32>
    %cst_35 = arith.constant 0.000000e+00 : f32
    %41 = vector.broadcast %cst_35 : f32 to vector<8x128xf32>
    %42 = arith.subf %41, %40 : vector<8x128xf32>
    %43 = math.exp %42 : vector<8x128xf32>
    %cst_36 = arith.constant 1.000000e+00 : f32
    %44 = vector.broadcast %cst_36 : f32 to vector<8x128xf32>
    %45 = arith.addf %44, %43 : vector<8x128xf32>
    %46 = tpu.reciprocal %45 {approx = true} : vector<8x128xf32> -> vector<8x128xf32>
    %c0_37 = arith.constant 0 : index
    %c0_38 = arith.constant 0 : index
    %47 = vector.load %arg14[%c0_37, %c0_38] : memref<8x128xf32, #tpu.memory_space<vmem>>, vector<8x128xf32>
    tpu.vector_store %arg14[%c0_37, %c0_38], %46 {strides = array<i32>} : memref<8x128xf32, #tpu.memory_space<vmem>>, vector<8x128xf32>,
    return
  }
  func.func @transform_0(%arg0: i32) -> (i32, i32) {
    %c0_i32 = arith.constant 0 : i32
    %c0_i32_0 = arith.constant 0 : i32
    return %arg0, %c0_i32 : i32, i32
  }
  func.func @transform_1(%arg0: i32) -> (i32, i32) {
    %c0_i32 = arith.constant 0 : i32
    %c0_i32_0 = arith.constant 0 : i32
    %c0_i32_1 = arith.constant 0 : i32
    return %c0_i32, %c0_i32_0 : i32, i32
  }
  func.func @transform_2(%arg0: i32) -> (i32, i32) {
    %c0_i32 = arith.constant 0 : i32
    %c0_i32_0 = arith.constant 0 : i32
    %c0_i32_1 = arith.constant 0 : i32
    return %c0_i32, %c0_i32_0 : i32, i32
  }
  func.func @transform_3(%arg0: i32) -> (i32, i32) {
    %c0_i32 = arith.constant 0 : i32
    %c0_i32_0 = arith.constant 0 : i32
    %c0_i32_1 = arith.constant 0 : i32
    return %c0_i32, %c0_i32_0 : i32, i32
  }
  func.func @transform_4(%arg0: i32) -> (i32, i32) {
    %c0_i32 = arith.constant 0 : i32
    %c0_i32_0 = arith.constant 0 : i32
    %c0_i32_1 = arith.constant 0 : i32
    return %c0_i32, %c0_i32_0 : i32, i32
  }
  func.func @transform_5(%arg0: i32) -> (i32, i32) {
    %c0_i32 = arith.constant 0 : i32
    %c0_i32_0 = arith.constant 0 : i32
    %c0_i32_1 = arith.constant 0 : i32
    return %c0_i32, %c0_i32_0 : i32, i32
  }
  func.func @transform_6(%arg0: i32) -> (i32, i32) {
    %c0_i32 = arith.constant 0 : i32
    %c0_i32_0 = arith.constant 0 : i32
    %c0_i32_1 = arith.constant 0 : i32
    return %c0_i32, %c0_i32_0 : i32, i32
  }
  func.func @transform_7(%arg0: i32) -> (i32, i32) {
    %c0_i32 = arith.constant 0 : i32
    %c0_i32_0 = arith.constant 0 : i32
    %c0_i32_1 = arith.constant 0 : i32
    return %c0_i32, %c0_i32_0 : i32, i32
  }
  func.func @transform_8(%arg0: i32) -> (i32, i32) {
    %c0_i32 = arith.constant 0 : i32
    %c0_i32_0 = arith.constant 0 : i32
    %c0_i32_1 = arith.constant 0 : i32
    return %c0_i32, %c0_i32_0 : i32, i32
  }
  func.func @transform_9(%arg0: i32) -> (i32, i32) {
    %c0_i32 = arith.constant 0 : i32
    %c0_i32_0 = arith.constant 0 : i32
    %c0_i32_1 = arith.constant 0 : i32
    return %c0_i32, %c0_i32_0 : i32, i32
  }
  func.func @transform_10(%arg0: i32) -> (i32, i32) {
    %c0_i32 = arith.constant 0 : i32
    %c0_i32_0 = arith.constant 0 : i32
    %c0_i32_1 = arith.constant 0 : i32
    return %c0_i32, %c0_i32_0 : i32, i32
  }
  func.func @transform_11(%arg0: i32) -> (i32, i32) {
    %c0_i32 = arith.constant 0 : i32
    %c0_i32_0 = arith.constant 0 : i32
    %c0_i32_1 = arith.constant 0 : i32
    return %c0_i32, %c0_i32_0 : i32, i32
  }
  func.func @transform_12(%arg0: i32) -> (i32, i32) {
    %c0_i32 = arith.constant 0 : i32
    %c0_i32_0 = arith.constant 0 : i32
    %c0_i32_1 = arith.constant 0 : i32
    return %c0_i32, %c0_i32_0 : i32, i32
  }
  func.func @transform_13(%arg0: i32) -> (i32, i32) {
    %c0_i32 = arith.constant 0 : i32
    %c0_i32_0 = arith.constant 0 : i32
    return %arg0, %c0_i32 : i32, i32
  }
}

</mosaic_0001>

<llo_original>
// kernel: tpu_custom_call.1
$region0: #{tpu_custom_call.1}
  #allocation0 [shape = 'u32[]', space=smem, size = 0x4, offset = 0x4, fixed_abs, tag = 'smem constant byte address 0x4 - core index']
  #allocation1 [shape = 'u32[144,128]{1,0:T(1,128)}', space=vmem, size = 0x12000, scoped, tag = 'internal scratch']
  %s0 = inlined_call_operand.vmem [shape: f32[16,128], index: 0, kind: input, shape index: {}]
  %s1 = inlined_call_operand.vmem [shape: f32[128,64], index: 1, kind: input, shape index: {}]
  %s2 = inlined_call_operand.vmem [shape: f32[1,64], index: 2, kind: input, shape index: {}]
  %s3 = inlined_call_operand.vmem [shape: f32[64,32], index: 3, kind: input, shape index: {}]
  %s4 = inlined_call_operand.vmem [shape: f32[1,32], index: 4, kind: input, shape index: {}]
  %s5 = inlined_call_operand.vmem [shape: f32[32,16], index: 5, kind: input, shape index: {}]
  %s6 = inlined_call_operand.vmem [shape: f32[1,16], index: 6, kind: input, shape index: {}]
  %s7 = inlined_call_operand.vmem [shape: f32[16,32], index: 7, kind: input, shape index: {}]
  %s8 = inlined_call_operand.vmem [shape: f32[1,32], index: 8, kind: input, shape index: {}]
  %s9 = inlined_call_operand.vmem [shape: f32[32,64], index: 9, kind: input, shape index: {}]
  %s10 = inlined_call_operand.vmem [shape: f32[1,64], index: 10, kind: input, shape index: {}]
  %s11 = inlined_call_operand.vmem [shape: f32[64,128], index: 11, kind: input, shape index: {}]
  %s12 = inlined_call_operand.vmem [shape: f32[1,128], index: 12, kind: input, shape index: {}]
  %s13 = inlined_call_operand.hbm [shape: f32[16,128], index: 13, kind: output, shape index: {}]
  %s14 = sld [smem:[#allocation0]]
  $region85: #{tpu_custom_call.1} parent=0
    _
  %s16 = ssub.s32 1, %s14
  %s17 = scalar_select 0, %s16, %s14
  $region1: #{tpu_custom_call.1} parent=0
    #allocation2 [shape = 'u8[8192]{0}', space=vmem, size = 0x2000, scoped, tag = 'output window, operand 0']
    #allocation3 [shape = 's32[2]{0}', space=sflag, size = 0x8, scoped, tag = 'scoped memory for tpu_custom_call.1']
    %18 = vsyncpa [#allocation3], 0
    %s19 = scalar_lea.sflag [#allocation3], 1
    %20 = vsyncpa %s19, 0
    loop: start=0, step=1, limit=4
    $region2: #{tpu_custom_call.1} parent=1 // loop_pre_header
      _
    $region3: #{tpu_custom_call.1} parent=1 // loop_header
      %s22 = sphi 0, %s26
      %p23 = scmp.ge.s32.totalorder %s22, 4
      %s32 = sphi 0, %s34
      %s35 = sphi 0, %s32
      %s36 = sphi 0, %s35
      %s52 = sphi 0, %s36
      %s56 = sphi 0, %s56
      %s58 = sphi 0, %s56
      %s59 = sphi 0, %s58
      %s73 = sphi 0, %s59
      %s77 = sphi 0, %s77
      %s79 = sphi 0, %s77
      %s80 = sphi 0, %s79
      %s94 = sphi 0, %s80
      %s98 = sphi 0, %s98
      %s100 = sphi 0, %s98
      %s101 = sphi 0, %s100
      %s115 = sphi 0, %s101
      %s119 = sphi 0, %s119
      %s121 = sphi 0, %s119
      %s122 = sphi 0, %s121
      %s136 = sphi 0, %s122
      %s140 = sphi 0, %s140
      %s142 = sphi 0, %s140
      %s143 = sphi 0, %s142
      %s157 = sphi 0, %s143
      %s161 = sphi 0, %s161
      %s163 = sphi 0, %s161
      %s164 = sphi 0, %s163
      %s178 = sphi 0, %s164
      %s182 = sphi 0, %s182
      %s184 = sphi 0, %s182
      %s185 = sphi 0, %s184
      %s199 = sphi 0, %s185
      %s203 = sphi 0, %s203
      %s205 = sphi 0, %s203
      %s206 = sphi 0, %s205
      %s220 = sphi 0, %s206
      %s224 = sphi 0, %s224
      %s226 = sphi 0, %s224
      %s227 = sphi 0, %s226
      %s241 = sphi 0, %s227
      %s245 = sphi 0, %s245
      %s247 = sphi 0, %s245
      %s248 = sphi 0, %s247
      %s262 = sphi 0, %s248
      %s266 = sphi 0, %s266
      %s268 = sphi 0, %s266
      %s269 = sphi 0, %s268
      %s283 = sphi 0, %s269
      %s287 = sphi 0, %s287
      %s289 = sphi 0, %s287
      %s290 = sphi 0, %s289
      %s304 = sphi 0, %s290
      %s310 = sphi 0, %s312
      %s313 = sphi 0, %s310
      %s314 = sphi 0, %s313
      %s330 = sphi 0, %s314
    $region4: #{tpu_custom_call.1} parent=1 // loop_header_branch
      %25 = sbr.rel (%p23) target = $region8
    $region5: #{tpu_custom_call.1} parent=1 // loop_body
      %s27 = ssub.s32 %s22, 1
      %s28 = ssub.s32 %s22, 2
      %s29 = sadd.s32 %s22, 1
      %s30 = ssub.s32 %s22, %s29
      %p31 = scmp.eq.s32.totalorder %s30, 0
      %s33 = sadd.s32 %s32, 1
      %s34 = scalar_select %p31, %s32, %s33
      %p37 = pneg %p31
      %p38 = scmp.eq.s32.totalorder %s22, 1
      %p39 = por %p37, %p38
      %p40 = scmp.ne.s32.totalorder %s32, %s35
      %p41 = scmp.eq.s32.totalorder %s22, 0
      %p42 = por %p40, %p41
      %p43 = scmp.ne.s32.totalorder %s32, %s35
      %p44 = scmp.eq.s32.totalorder %s27, 1
      %p45 = por %p43, %p44
      %p46 = scmp.ne.s32.totalorder %s35, %s36
      %p47 = scmp.eq.s32.totalorder %s27, 0
      %p48 = por %p46, %p47
      %p49 = scmp.ne.s32.totalorder %s35, %s36
      %p50 = scmp.eq.s32.totalorder %s28, 1
      %p51 = por %p49, %p50
      %p53 = scmp.ne.s32.totalorder %s36, %s52
      %p54 = scmp.eq.s32.totalorder %s28, 0
      %p55 = por %p53, %p54
      %s57 = sadd.s32 %s56, 1
      %p60 = scmp.eq.s32.totalorder %s22, 1
      %p61 = scmp.ne.s32.totalorder %s56, %s58
      %p62 = scmp.eq.s32.totalorder %s22, 0
      %p63 = por %p61, %p62
      %p64 = scmp.ne.s32.totalorder %s56, %s58
      %p65 = scmp.eq.s32.totalorder %s27, 1
      %p66 = por %p64, %p65
      %p67 = scmp.ne.s32.totalorder %s58, %s59
      %p68 = scmp.eq.s32.totalorder %s27, 0
      %p69 = por %p67, %p68
      %p70 = scmp.ne.s32.totalorder %s58, %s59
      %p71 = scmp.eq.s32.totalorder %s28, 1
      %p72 = por %p70, %p71
      %p74 = scmp.ne.s32.totalorder %s59, %s73
      %p75 = scmp.eq.s32.totalorder %s28, 0
      %p76 = por %p74, %p75
      %s78 = sadd.s32 %s77, 1
      %p81 = scmp.eq.s32.totalorder %s22, 1
      %p82 = scmp.ne.s32.totalorder %s77, %s79
      %p83 = scmp.eq.s32.totalorder %s22, 0
      %p84 = por %p82, %p83
      %p85 = scmp.ne.s32.totalorder %s77, %s79
      %p86 = scmp.eq.s32.totalorder %s27, 1
      %p87 = por %p85, %p86
      %p88 = scmp.ne.s32.totalorder %s79, %s80
      %p89 = scmp.eq.s32.totalorder %s27, 0
      %p90 = por %p88, %p89
      %p91 = scmp.ne.s32.totalorder %s79, %s80
      %p92 = scmp.eq.s32.totalorder %s28, 1
      %p93 = por %p91, %p92
      %p95 = scmp.ne.s32.totalorder %s80, %s94
      %p96 = scmp.eq.s32.totalorder %s28, 0
      %p97 = por %p95, %p96
      %s99 = sadd.s32 %s98, 1
      %p102 = scmp.eq.s32.totalorder %s22, 1
      %p103 = scmp.ne.s32.totalorder %s98, %s100
      %p104 = scmp.eq.s32.totalorder %s22, 0
      %p105 = por %p103, %p104
      %p106 = scmp.ne.s32.totalorder %s98, %s100
      %p107 = scmp.eq.s32.totalorder %s27, 1
      %p108 = por %p106, %p107
      %p109 = scmp.ne.s32.totalorder %s100, %s101
      %p110 = scmp.eq.s32.totalorder %s27, 0
      %p111 = por %p109, %p110
      %p112 = scmp.ne.s32.totalorder %s100, %s101
      %p113 = scmp.eq.s32.totalorder %s28, 1
      %p114 = por %p112, %p113
      %p116 = scmp.ne.s32.totalorder %s101, %s115
      %p117 = scmp.eq.s32.totalorder %s28, 0
      %p118 = por %p116, %p117
      %s120 = sadd.s32 %s119, 1
      %p123 = scmp.eq.s32.totalorder %s22, 1
      %p124 = scmp.ne.s32.totalorder %s119, %s121
      %p125 = scmp.eq.s32.totalorder %s22, 0
      %p126 = por %p124, %p125
      %p127 = scmp.ne.s32.totalorder %s119, %s121
      %p128 = scmp.eq.s32.totalorder %s27, 1
      %p129 = por %p127, %p128
      %p130 = scmp.ne.s32.totalorder %s121, %s122
      %p131 = scmp.eq.s32.totalorder %s27, 0
      %p132 = por %p130, %p131
      %p133 = scmp.ne.s32.totalorder %s121, %s122
      %p134 = scmp.eq.s32.totalorder %s28, 1
      %p135 = por %p133, %p134
      %p137 = scmp.ne.s32.totalorder %s122, %s136
      %p138 = scmp.eq.s32.totalorder %s28, 0
      %p139 = por %p137, %p138
      %s141 = sadd.s32 %s140, 1
      %p144 = scmp.eq.s32.totalorder %s22, 1
      %p145 = scmp.ne.s32.totalorder %s140, %s142
      %p146 = scmp.eq.s32.totalorder %s22, 0
      %p147 = por %p145, %p146
      %p148 = scmp.ne.s32.totalorder %s140, %s142
      %p149 = scmp.eq.s32.totalorder %s27, 1
      %p150 = por %p148, %p149
      %p151 = scmp.ne.s32.totalorder %s142, %s143
      %p152 = scmp.eq.s32.totalorder %s27, 0
      %p153 = por %p151, %p152
      %p154 = scmp.ne.s32.totalorder %s142, %s143
      %p155 = scmp.eq.s32.totalorder %s28, 1
      %p156 = por %p154, %p155
      %p158 = scmp.ne.s32.totalorder %s143, %s157
      %p159 = scmp.eq.s32.totalorder %s28, 0
      %p160 = por %p158, %p159
      %s162 = sadd.s32 %s161, 1
      %p165 = scmp.eq.s32.totalorder %s22, 1
      %p166 = scmp.ne.s32.totalorder %s161, %s163
      %p167 = scmp.eq.s32.totalorder %s22, 0
      %p168 = por %p166, %p167
      %p169 = scmp.ne.s32.totalorder %s161, %s163
      %p170 = scmp.eq.s32.totalorder %s27, 1
      %p171 = por %p169, %p170
      %p172 = scmp.ne.s32.totalorder %s163, %s164
      %p173 = scmp.eq.s32.totalorder %s27, 0
      %p174 = por %p172, %p173
      %p175 = scmp.ne.s32.totalorder %s163, %s164
      %p176 = scmp.eq.s32.totalorder %s28, 1
      %p177 = por %p175, %p176
      %p179 = scmp.ne.s32.totalorder %s164, %s178
      %p180 = scmp.eq.s32.totalorder %s28, 0
      %p181 = por %p179, %p180
      %s183 = sadd.s32 %s182, 1
      %p186 = scmp.eq.s32.totalorder %s22, 1
      %p187 = scmp.ne.s32.totalorder %s182, %s184
      %p188 = scmp.eq.s32.totalorder %s22, 0
      %p189 = por %p187, %p188
      %p190 = scmp.ne.s32.totalorder %s182, %s184
      %p191 = scmp.eq.s32.totalorder %s27, 1
      %p192 = por %p190, %p191
      %p193 = scmp.ne.s32.totalorder %s184, %s185
      %p194 = scmp.eq.s32.totalorder %s27, 0
      %p195 = por %p193, %p194
      %p196 = scmp.ne.s32.totalorder %s184, %s185
      %p197 = scmp.eq.s32.totalorder %s28, 1
      %p198 = por %p196, %p197
      %p200 = scmp.ne.s32.totalorder %s185, %s199
      %p201 = scmp.eq.s32.totalorder %s28, 0
      %p202 = por %p200, %p201
      %s204 = sadd.s32 %s203, 1
      %p207 = scmp.eq.s32.totalorder %s22, 1
      %p208 = scmp.ne.s32.totalorder %s203, %s205
      %p209 = scmp.eq.s32.totalorder %s22, 0
      %p210 = por %p208, %p209
      %p211 = scmp.ne.s32.totalorder %s203, %s205
      %p212 = scmp.eq.s32.totalorder %s27, 1
      %p213 = por %p211, %p212
      %p214 = scmp.ne.s32.totalorder %s205, %s206
      %p215 = scmp.eq.s32.totalorder %s27, 0
      %p216 = por %p214, %p215
      %p217 = scmp.ne.s32.totalorder %s205, %s206
      %p218 = scmp.eq.s32.totalorder %s28, 1
      %p219 = por %p217, %p218
      %p221 = scmp.ne.s32.totalorder %s206, %s220
      %p222 = scmp.eq.s32.totalorder %s28, 0
      %p223 = por %p221, %p222
      %s225 = sadd.s32 %s224, 1
      %p228 = scmp.eq.s32.totalorder %s22, 1
      %p229 = scmp.ne.s32.totalorder %s224, %s226
      %p230 = scmp.eq.s32.totalorder %s22, 0
      %p231 = por %p229, %p230
      %p232 = scmp.ne.s32.totalorder %s224, %s226
      %p233 = scmp.eq.s32.totalorder %s27, 1
      %p234 = por %p232, %p233
      %p235 = scmp.ne.s32.totalorder %s226, %s227
      %p236 = scmp.eq.s32.totalorder %s27, 0
      %p237 = por %p235, %p236
      %p238 = scmp.ne.s32.totalorder %s226, %s227
      %p239 = scmp.eq.s32.totalorder %s28, 1
      %p240 = por %p238, %p239
      %p242 = scmp.ne.s32.totalorder %s227, %s241
      %p243 = scmp.eq.s32.totalorder %s28, 0
      %p244 = por %p242, %p243
      %s246 = sadd.s32 %s245, 1
      %p249 = scmp.eq.s32.totalorder %s22, 1
      %p250 = scmp.ne.s32.totalorder %s245, %s247
      %p251 = scmp.eq.s32.totalorder %s22, 0
      %p252 = por %p250, %p251
      %p253 = scmp.ne.s32.totalorder %s245, %s247
      %p254 = scmp.eq.s32.totalorder %s27, 1
      %p255 = por %p253, %p254
      %p256 = scmp.ne.s32.totalorder %s247, %s248
      %p257 = scmp.eq.s32.totalorder %s27, 0
      %p258 = por %p256, %p257
      %p259 = scmp.ne.s32.totalorder %s247, %s248
      %p260 = scmp.eq.s32.totalorder %s28, 1
      %p261 = por %p259, %p260
      %p263 = scmp.ne.s32.totalorder %s248, %s262
      %p264 = scmp.eq.s32.totalorder %s28, 0
      %p265 = por %p263, %p264
      %s267 = sadd.s32 %s266, 1
      %p270 = scmp.eq.s32.totalorder %s22, 1
      %p271 = scmp.ne.s32.totalorder %s266, %s268
      %p272 = scmp.eq.s32.totalorder %s22, 0
      %p273 = por %p271, %p272
      %p274 = scmp.ne.s32.totalorder %s266, %s268
      %p275 = scmp.eq.s32.totalorder %s27, 1
      %p276 = por %p274, %p275
      %p277 = scmp.ne.s32.totalorder %s268, %s269
      %p278 = scmp.eq.s32.totalorder %s27, 0
      %p279 = por %p277, %p278
      %p280 = scmp.ne.s32.totalorder %s268, %s269
      %p281 = scmp.eq.s32.totalorder %s28, 1
      %p282 = por %p280, %p281
      %p284 = scmp.ne.s32.totalorder %s269, %s283
      %p285 = scmp.eq.s32.totalorder %s28, 0
      %p286 = por %p284, %p285
      %s288 = sadd.s32 %s287, 1
      %p291 = scmp.eq.s32.totalorder %s22, 1
      %p292 = scmp.ne.s32.totalorder %s287, %s289
      %p293 = scmp.eq.s32.totalorder %s22, 0
      %p294 = por %p292, %p293
      %p295 = scmp.ne.s32.totalorder %s287, %s289
      %p296 = scmp.eq.s32.totalorder %s27, 1
      %p297 = por %p295, %p296
      %p298 = scmp.ne.s32.totalorder %s289, %s290
      %p299 = scmp.eq.s32.totalorder %s27, 0
      %p300 = por %p298, %p299
      %p301 = scmp.ne.s32.totalorder %s289, %s290
      %p302 = scmp.eq.s32.totalorder %s28, 1
      %p303 = por %p301, %p302
      %p305 = scmp.ne.s32.totalorder %s290, %s304
      %p306 = scmp.eq.s32.totalorder %s28, 0
      %p307 = por %p305, %p306
      %s308 = ssub.s32 %s22, %s29
      %p309 = scmp.eq.s32.totalorder %s308, 0
      %s311 = sadd.s32 %s310, 1
      %s312 = scalar_select %p309, %s310, %s311
      %p315 = pneg %p309
      %p316 = scmp.eq.s32.totalorder %s22, 1
      %p317 = por %p315, %p316
      %p318 = scmp.ne.s32.totalorder %s310, %s313
      %p319 = scmp.eq.s32.totalorder %s22, 0
      %p320 = por %p318, %p319
      %p321 = scmp.ne.s32.totalorder %s310, %s313
      %p322 = scmp.eq.s32.totalorder %s27, 1
      %p323 = por %p321, %p322
      %p324 = scmp.ne.s32.totalorder %s313, %s314
      %p325 = scmp.eq.s32.totalorder %s27, 0
      %p326 = por %p324, %p325
      %p327 = scmp.ne.s32.totalorder %s313, %s314
      %p328 = scmp.eq.s32.totalorder %s28, 1
      %p329 = por %p327, %p328
      %p331 = scmp.ne.s32.totalorder %s314, %s330
      %p332 = scmp.eq.s32.totalorder %s28, 0
      %p333 = por %p331, %p332
      %p334 = scmp.le.s32.totalorder 1, %s22
      %p335 = scmp.lt.s32.totalorder %s22, 3
      %p336 = pnand %p334, %p335
      %p337 = pneg %p336
      // Predicated region
      $region9: #{tpu_custom_call.1} parent=5 // pred_check
        _
      $region10: #{tpu_custom_call.1} parent=5 // pred_check_branch
        %339 = sbr.rel (%p336) target = $region12
      $region11: #{tpu_custom_call.1} parent=5 // pred_region
        %s340 = ssub.s32 %s22, 1
        // Predicated region
        $region13: #{tpu_custom_call.1} parent=11 // pred_check
          %p341 = pneg %p69
        $region14: #{tpu_custom_call.1} parent=11 // pred_check_branch
          %343 = sbr.rel (%p341) target = $region16
        $region15: #{tpu_custom_call.1} parent=11 // pred_region
          _
        $region16: #{tpu_custom_call.1} parent=11 // pred_fallthru
          _
        // Predicated region
        $region17: #{tpu_custom_call.1} parent=11 // pred_check
          %p344 = pneg %p90
        $region18: #{tpu_custom_call.1} parent=11 // pred_check_branch
          %346 = sbr.rel (%p344) target = $region20
        $region19: #{tpu_custom_call.1} parent=11 // pred_region
          _
        $region20: #{tpu_custom_call.1} parent=11 // pred_fallthru
          _
        // Predicated region
        $region21: #{tpu_custom_call.1} parent=11 // pred_check
          %p347 = pneg %p111
        $region22: #{tpu_custom_call.1} parent=11 // pred_check_branch
          %349 = sbr.rel (%p347) target = $region24
        $region23: #{tpu_custom_call.1} parent=11 // pred_region
          _
        $region24: #{tpu_custom_call.1} parent=11 // pred_fallthru
          _
        // Predicated region
        $region25: #{tpu_custom_call.1} parent=11 // pred_check
          %p350 = pneg %p132
        $region26: #{tpu_custom_call.1} parent=11 // pred_check_branch
          %352 = sbr.rel (%p350) target = $region28
        $region27: #{tpu_custom_call.1} parent=11 // pred_region
          _
        $region28: #{tpu_custom_call.1} parent=11 // pred_fallthru
          _
        // Predicated region
        $region29: #{tpu_custom_call.1} parent=11 // pred_check
          %p353 = pneg %p153
        $region30: #{tpu_custom_call.1} parent=11 // pred_check_branch
          %355 = sbr.rel (%p353) target = $region32
        $region31: #{tpu_custom_call.1} parent=11 // pred_region
          _
        $region32: #{tpu_custom_call.1} parent=11 // pred_fallthru
          _
        // Predicated region
        $region33: #{tpu_custom_call.1} parent=11 // pred_check
          %p356 = pneg %p174
        $region34: #{tpu_custom_call.1} parent=11 // pred_check_branch
          %358 = sbr.rel (%p356) target = $region36
        $region35: #{tpu_custom_call.1} parent=11 // pred_region
          _
        $region36: #{tpu_custom_call.1} parent=11 // pred_fallthru
          _
        // Predicated region
        $region37: #{tpu_custom_call.1} parent=11 // pred_check
          %p359 = pneg %p195
        $region38: #{tpu_custom_call.1} parent=11 // pred_check_branch
          %361 = sbr.rel (%p359) target = $region40
        $region39: #{tpu_custom_call.1} parent=11 // pred_region
          _
        $region40: #{tpu_custom_call.1} parent=11 // pred_fallthru
          _
        // Predicated region
        $region41: #{tpu_custom_call.1} parent=11 // pred_check
          %p362 = pneg %p216
        $region42: #{tpu_custom_call.1} parent=11 // pred_check_branch
          %364 = sbr.rel (%p362) target = $region44
        $region43: #{tpu_custom_call.1} parent=11 // pred_region
          _
        $region44: #{tpu_custom_call.1} parent=11 // pred_fallthru
          _
        // Predicated region
        $region45: #{tpu_custom_call.1} parent=11 // pred_check
          %p365 = pneg %p237
        $region46: #{tpu_custom_call.1} parent=11 // pred_check_branch
          %367 = sbr.rel (%p365) target = $region48
        $region47: #{tpu_custom_call.1} parent=11 // pred_region
          _
        $region48: #{tpu_custom_call.1} parent=11 // pred_fallthru
          _
        // Predicated region
        $region49: #{tpu_custom_call.1} parent=11 // pred_check
          %p368 = pneg %p258
        $region50: #{tpu_custom_call.1} parent=11 // pred_check_branch
          %370 = sbr.rel (%p368) target = $region52
        $region51: #{tpu_custom_call.1} parent=11 // pred_region
          _
        $region52: #{tpu_custom_call.1} parent=11 // pred_fallthru
          _
        // Predicated region
        $region53: #{tpu_custom_call.1} parent=11 // pred_check
          %p371 = pneg %p279
        $region54: #{tpu_custom_call.1} parent=11 // pred_check_branch
          %373 = sbr.rel (%p371) target = $region56
        $region55: #{tpu_custom_call.1} parent=11 // pred_region
          _
        $region56: #{tpu_custom_call.1} parent=11 // pred_fallthru
          _
        // Predicated region
        $region57: #{tpu_custom_call.1} parent=11 // pred_check
          %p374 = pneg %p300
        $region58: #{tpu_custom_call.1} parent=11 // pred_check_branch
          %376 = sbr.rel (%p374) target = $region60
        $region59: #{tpu_custom_call.1} parent=11 // pred_region
          _
        $region60: #{tpu_custom_call.1} parent=11 // pred_fallthru
          _
      $region12: #{tpu_custom_call.1} parent=5 // pred_fallthru
        _
      %p377 = scmp.lt.s32.totalorder %s22, 2
      // Predicated region
      $region61: #{tpu_custom_call.1} parent=5 // pred_check
        %p378 = pneg %p377
      $region62: #{tpu_custom_call.1} parent=5 // pred_check_branch
        %380 = sbr.rel (%p378) target = $region64
      $region63: #{tpu_custom_call.1} parent=5 // pred_region
        // Predicated region
        $region65: #{tpu_custom_call.1} parent=63 // pred_check
          %p381 = pneg %p42
        $region66: #{tpu_custom_call.1} parent=63 // pred_check_branch
          %383 = sbr.rel (%p381) target = $region68
        $region67: #{tpu_custom_call.1} parent=63 // pred_region
          %p384 = scmp.lt.s32.totalorder %s22, 1
          %s385 = scalar_select %p384, %s22, 1
          %s386 = smul.addr %s385, 8
          %s387 = scalar_lea.vmem %s0, %s386
        $region68: #{tpu_custom_call.1} parent=63 // pred_fallthru
          _
      $region64: #{tpu_custom_call.1} parent=5 // pred_fallthru
        _
      %p388 = scmp.le.s32.totalorder 1, %s22
      %p389 = scmp.lt.s32.totalorder %s22, 3
      %p390 = pnand %p388, %p389
      %p391 = pneg %p390
      // Predicated region
      $region69: #{tpu_custom_call.1} parent=5 // pred_check
        _
      $region70: #{tpu_custom_call.1} parent=5 // pred_check_branch
        %393 = sbr.rel (%p390) target = $region72
      $region71: #{tpu_custom_call.1} parent=5 // pred_region
        %s394 = ssub.s32 %s22, 1
        %p395 = scmp.lt.s32.totalorder %s27, 1
        %s396 = scalar_select %p395, %s27, 1
        %s397 = smul.addr %s396, 8
        %s398 = scalar_lea.vmem %s0, %s397
        %p399 = pneg %p48
        %p400 = pneg %p45
        %p401 = pneg %p69
        %p402 = pneg %p66
        %p403 = pneg %p90
        %p404 = pneg %p87
        %p405 = pneg %p111
        %p406 = pneg %p108
        %p407 = pneg %p132
        %p408 = pneg %p129
        %p409 = pneg %p153
        %p410 = pneg %p150
        %p411 = pneg %p174
        %p412 = pneg %p171
        %p413 = pneg %p195
        %p414 = pneg %p192
        %p415 = pneg %p216
        %p416 = pneg %p213
        %p417 = pneg %p237
        %p418 = pneg %p234
        %p419 = pneg %p258
        %p420 = pneg %p255
        %p421 = pneg %p279
        %p422 = pneg %p276
        %p423 = pneg %p300
        %p424 = pneg %p297
        %p425 = pneg %p326
        %p426 = pneg %p323
        %s427 = sand.u32 %s313, 1
        %s428 = scalar_lea.sflag [#allocation3], %s427
        %s429 = sand.u32 %s313, 1
        %s430 = smul.addr %s429, 8
        %s431 = scalar_lea.vmem [#allocation2], %s430
        %p432 = scmp.lt.s32.totalorder %s27, 1
        %s433 = scalar_select %p432, %s27, 1
        %s434 = smul.addr %s433, 8
        %s435 = scalar_lea.vmem %s0, %s434
        %v436 = vld [vmem:[%s435] sm:$0xff]
        %v437 = vld [vmem:[%s1] sm:$0xff]
        %v438 = vld [vmem:[%s1 + $0x8] sm:$0xff]
        %v439 = vld [vmem:[%s1 + $0x10] sm:$0xff]
        %v440 = vld [vmem:[%s1 + $0x18] sm:$0xff]
        %v441 = vld [vmem:[%s1 + $0x20] sm:$0xff]
        %v442 = vld [vmem:[%s1 + $0x28] sm:$0xff]
        %v443 = vld [vmem:[%s1 + $0x30] sm:$0xff]
        %v444 = vld [vmem:[%s1 + $0x38] sm:$0xff]
        %v445 = vld [vmem:[%s1 + $0x40] sm:$0xff]
        %v446 = vld [vmem:[%s1 + $0x48] sm:$0xff]
        %v447 = vld [vmem:[%s1 + $0x50] sm:$0xff]
        %v448 = vld [vmem:[%s1 + $0x58] sm:$0xff]
        %v449 = vld [vmem:[%s1 + $0x60] sm:$0xff]
        %v450 = vld [vmem:[%s1 + $0x68] sm:$0xff]
        %v451 = vld [vmem:[%s1 + $0x70] sm:$0xff]
        %v452 = vld [vmem:[%s1 + $0x78] sm:$0xff]
        %v453 = vld [vmem:[%s2] sm:$0x1]
        %v455 = vlaneseq
        %v456 = vshrl.u32 %v455, 7
        %v457 = vsub.s32 0, %v456
        %v458 = vrot.slane %v453, %v457
        %460 = vmatprep.subr.mxu0 0.0
        %461 = vmatpush1.msra.mxu0 %v437
        %462 = vmatprep.subr.mxu0 0.0
        %463 = vmatpush1.msra.mxu0 %v438
        %464 = vmatprep.subr.mxu0 0.0
        %465 = vmatpush1.msra.mxu0 %v439
        %466 = vmatprep.subr.mxu0 0.0
        %467 = vmatpush1.msra.mxu0 %v440
        %468 = vmatprep.subr.mxu0 0.0
        %469 = vmatpush1.msra.mxu0 %v441
        %470 = vmatprep.subr.mxu0 0.0
        %471 = vmatpush1.msra.mxu0 %v442
        %472 = vmatprep.subr.mxu0 0.0
        %473 = vmatpush1.msra.mxu0 %v443
        %474 = vmatprep.subr.mxu0 0.0
        %475 = vmatpush1.msra.mxu0 %v444
        %476 = vmatprep.subr.mxu0 0.0
        %477 = vmatpush1.msra.mxu0 %v445
        %478 = vmatprep.subr.mxu0 0.0
        %479 = vmatpush1.msra.mxu0 %v446
        %480 = vmatprep.subr.mxu0 0.0
        %481 = vmatpush1.msra.mxu0 %v447
        %482 = vmatprep.subr.mxu0 0.0
        %483 = vmatpush1.msra.mxu0 %v448
        %484 = vmatprep.subr.mxu0 0.0
        %485 = vmatpush1.msra.mxu0 %v449
        %486 = vmatprep.subr.mxu0 0.0
        %487 = vmatpush1.msra.mxu0 %v450
        %488 = vmatprep.subr.mxu0 0.0
        %489 = vmatpush1.msra.mxu0 %v451
        %490 = vmatprep.subr.mxu0 0.0
        %491 = vmatpush1.msra.mxu0 %v452
        %492 = vmatprep.subr.mxu0 0.0
        %493 = vmatpush1.msra.mxu0 0.0
        %494 = vmatprep.subr.mxu0 0.0
        %495 = vmatpush1.msra.mxu0 0.0
        %496 = vmatprep.subr.mxu0 0.0
        %497 = vmatpush1.msra.mxu0 0.0
        %498 = vmatprep.subr.mxu0 0.0
        %499 = vmatpush1.msra.mxu0 0.0
        %500 = vmatprep.subr.mxu0 0.0
        %501 = vmatpush1.msra.mxu0 0.0
        %502 = vmatprep.subr.mxu0 0.0
        %503 = vmatpush1.msra.mxu0 0.0
        %504 = vmatprep.subr.mxu0 0.0
        %505 = vmatpush1.msra.mxu0 0.0
        %506 = vmatprep.subr.mxu0 0.0
        %507 = vmatpush1.msra.mxu0 0.0
        %508 = vmatprep.subr.mxu0 0.0
        %509 = vmatpush1.msra.mxu0 0.0
        %510 = vmatprep.subr.mxu0 0.0
        %511 = vmatpush1.msra.mxu0 0.0
        %512 = vmatprep.subr.mxu0 0.0
        %513 = vmatpush1.msra.mxu0 0.0
        %514 = vmatprep.subr.mxu0 0.0
        %515 = vmatpush1.msra.mxu0 0.0
        %516 = vmatprep.subr.mxu0 0.0
        %517 = vmatpush1.msra.mxu0 0.0
        %518 = vmatprep.subr.mxu0 0.0
        %519 = vmatpush1.msra.mxu0 0.0
        %520 = vmatprep.subr.mxu0 0.0
        %521 = vmatpush1.msra.mxu0 0.0
        %522 = vmatprep.subr.mxu0 0.0
        %523 = vmatpush1.msra.mxu0 0.0
        %524 = vmatprep.mubr.f32.mxu0 0.0
        %525 = vmatmul.mubr.f32.gmra.mrb[0].mxu0 %v436
        %v526 = vpop.f32.mrb[0].mxu0
        %v527 = vadd.f32 %v458, %v526
        %v528 = vpop.f32.mrb[0].mxu0
        %529 = vdwg.mxu0
        %v530 = vmax.f32 %v527, 0.0
        %v531 = vld [vmem:[%s3] sm:$0xff]
        %v532 = vld [vmem:[%s3 + $0x8] sm:$0xff]
        %v533 = vld [vmem:[%s3 + $0x10] sm:$0xff]
        %v534 = vld [vmem:[%s3 + $0x18] sm:$0xff]
        %v535 = vld [vmem:[%s3 + $0x20] sm:$0xff]
        %v536 = vld [vmem:[%s3 + $0x28] sm:$0xff]
        %v537 = vld [vmem:[%s3 + $0x30] sm:$0xff]
        %v538 = vld [vmem:[%s3 + $0x38] sm:$0xff]
        %v539 = vld [vmem:[%s4] sm:$0x1]
        %v541 = vlaneseq
        %v542 = vshrl.u32 %v541, 7
        %v543 = vsub.s32 0, %v542
        %v544 = vrot.slane %v539, %v543
        %vm546 = vcmask 523264
        %v548 = vsel %vm546, %v530, 0
        %550 = vmatprep.subr.mxu0 0.0
        %551 = vmatpush1.msra.mxu0 %v531
        %552 = vmatprep.subr.mxu0 0.0
        %553 = vmatpush1.msra.mxu0 %v532
        %554 = vmatprep.subr.mxu0 0.0
        %555 = vmatpush1.msra.mxu0 %v533
        %556 = vmatprep.subr.mxu0 0.0
        %557 = vmatpush1.msra.mxu0 %v534
        %558 = vmatprep.subr.mxu0 0.0
        %559 = vmatpush1.msra.mxu0 %v535
        %560 = vmatprep.subr.mxu0 0.0
        %561 = vmatpush1.msra.mxu0 %v536
        %562 = vmatprep.subr.mxu0 0.0
        %563 = vmatpush1.msra.mxu0 %v537
        %564 = vmatprep.subr.mxu0 0.0
        %565 = vmatpush1.msra.mxu0 %v538
        %566 = vmatprep.subr.mxu0 0.0
        %567 = vmatpush1.msra.mxu0 0.0
        %568 = vmatprep.subr.mxu0 0.0
        %569 = vmatpush1.msra.mxu0 0.0
        %570 = vmatprep.subr.mxu0 0.0
        %571 = vmatpush1.msra.mxu0 0.0
        %572 = vmatprep.subr.mxu0 0.0
        %573 = vmatpush1.msra.mxu0 0.0
        %574 = vmatprep.subr.mxu0 0.0
        %575 = vmatpush1.msra.mxu0 0.0
        %576 = vmatprep.subr.mxu0 0.0
        %577 = vmatpush1.msra.mxu0 0.0
        %578 = vmatprep.subr.mxu0 0.0
        %579 = vmatpush1.msra.mxu0 0.0
        %580 = vmatprep.subr.mxu0 0.0
        %581 = vmatpush1.msra.mxu0 0.0
        %582 = vmatprep.subr.mxu0 0.0
        %583 = vmatpush1.msra.mxu0 0.0
        %584 = vmatprep.subr.mxu0 0.0
        %585 = vmatpush1.msra.mxu0 0.0
        %586 = vmatprep.subr.mxu0 0.0
        %587 = vmatpush1.msra.mxu0 0.0
        %588 = vmatprep.subr.mxu0 0.0
        %589 = vmatpush1.msra.mxu0 0.0
        %590 = vmatprep.subr.mxu0 0.0
        %591 = vmatpush1.msra.mxu0 0.0
        %592 = vmatprep.subr.mxu0 0.0
        %593 = vmatpush1.msra.mxu0 0.0
        %594 = vmatprep.subr.mxu0 0.0
        %595 = vmatpush1.msra.mxu0 0.0
        %596 = vmatprep.subr.mxu0 0.0
        %597 = vmatpush1.msra.mxu0 0.0
        %598 = vmatprep.subr.mxu0 0.0
        %599 = vmatpush1.msra.mxu0 0.0
        %600 = vmatprep.subr.mxu0 0.0
        %601 = vmatpush1.msra.mxu0 0.0
        %602 = vmatprep.subr.mxu0 0.0
        %603 = vmatpush1.msra.mxu0 0.0
        %604 = vmatprep.subr.mxu0 0.0
        %605 = vmatpush1.msra.mxu0 0.0
        %606 = vmatprep.subr.mxu0 0.0
        %607 = vmatpush1.msra.mxu0 0.0
        %608 = vmatprep.subr.mxu0 0.0
        %609 = vmatpush1.msra.mxu0 0.0
        %610 = vmatprep.subr.mxu0 0.0
        %611 = vmatpush1.msra.mxu0 0.0
        %612 = vmatprep.subr.mxu0 0.0
        %613 = vmatpush1.msra.mxu0 0.0
        %614 = vmatprep.mubr.f32.mxu0 0.0
        %615 = vmatmul.mubr.f32.gmra.mrb[0].mxu0 %v548
        %v616 = vpop.f32.mrb[0].mxu0
        %v617 = vadd.f32 %v544, %v616
        %v618 = vpop.f32.mrb[0].mxu0
        %619 = vdwg.mxu0
        %v620 = vmax.f32 %v617, 0.0
        %v621 = vld [vmem:[%s5] sm:$0xff]
        %v622 = vld [vmem:[%s5 + $0x8] sm:$0xff]
        %v623 = vld [vmem:[%s5 + $0x10] sm:$0xff]
        %v624 = vld [vmem:[%s5 + $0x18] sm:$0xff]
        %v625 = vld [vmem:[%s6] sm:$0x1]
        %v627 = vlaneseq
        %v628 = vshrl.u32 %v627, 7
        %v629 = vsub.s32 0, %v628
        %v630 = vrot.slane %v625, %v629
        %vm632 = vcmask 261120
        %v634 = vsel %vm632, %v620, 0
        %636 = vmatprep.subr.mxu0 0.0
        %637 = vmatpush1.msra.mxu0 %v621
        %638 = vmatprep.subr.mxu0 0.0
        %639 = vmatpush1.msra.mxu0 %v622
        %640 = vmatprep.subr.mxu0 0.0
        %641 = vmatpush1.msra.mxu0 %v623
        %642 = vmatprep.subr.mxu0 0.0
        %643 = vmatpush1.msra.mxu0 %v624
        %644 = vmatprep.subr.mxu0 0.0
        %645 = vmatpush1.msra.mxu0 0.0
        %646 = vmatprep.subr.mxu0 0.0
        %647 = vmatpush1.msra.mxu0 0.0
        %648 = vmatprep.subr.mxu0 0.0
        %649 = vmatpush1.msra.mxu0 0.0
        %650 = vmatprep.subr.mxu0 0.0
        %651 = vmatpush1.msra.mxu0 0.0
        %652 = vmatprep.subr.mxu0 0.0
        %653 = vmatpush1.msra.mxu0 0.0
        %654 = vmatprep.subr.mxu0 0.0
        %655 = vmatpush1.msra.mxu0 0.0
        %656 = vmatprep.subr.mxu0 0.0
        %657 = vmatpush1.msra.mxu0 0.0
        %658 = vmatprep.subr.mxu0 0.0
        %659 = vmatpush1.msra.mxu0 0.0
        %660 = vmatprep.subr.mxu0 0.0
        %661 = vmatpush1.msra.mxu0 0.0
        %662 = vmatprep.subr.mxu0 0.0
        %663 = vmatpush1.msra.mxu0 0.0
        %664 = vmatprep.subr.mxu0 0.0
        %665 = vmatpush1.msra.mxu0 0.0
        %666 = vmatprep.subr.mxu0 0.0
        %667 = vmatpush1.msra.mxu0 0.0
        %668 = vmatprep.subr.mxu0 0.0
        %669 = vmatpush1.msra.mxu0 0.0
        %670 = vmatprep.subr.mxu0 0.0
        %671 = vmatpush1.msra.mxu0 0.0
        %672 = vmatprep.subr.mxu0 0.0
        %673 = vmatpush1.msra.mxu0 0.0
        %674 = vmatprep.subr.mxu0 0.0
        %675 = vmatpush1.msra.mxu0 0.0
        %676 = vmatprep.subr.mxu0 0.0
        %677 = vmatpush1.msra.mxu0 0.0
        %678 = vmatprep.subr.mxu0 0.0
        %679 = vmatpush1.msra.mxu0 0.0
        %680 = vmatprep.subr.mxu0 0.0
        %681 = vmatpush1.msra.mxu0 0.0
        %682 = vmatprep.subr.mxu0 0.0
        %683 = vmatpush1.msra.mxu0 0.0
        %684 = vmatprep.subr.mxu0 0.0
        %685 = vmatpush1.msra.mxu0 0.0
        %686 = vmatprep.subr.mxu0 0.0
        %687 = vmatpush1.msra.mxu0 0.0
        %688 = vmatprep.subr.mxu0 0.0
        %689 = vmatpush1.msra.mxu0 0.0
        %690 = vmatprep.subr.mxu0 0.0
        %691 = vmatpush1.msra.mxu0 0.0
        %692 = vmatprep.subr.mxu0 0.0
        %693 = vmatpush1.msra.mxu0 0.0
        %694 = vmatprep.subr.mxu0 0.0
        %695 = vmatpush1.msra.mxu0 0.0
        %696 = vmatprep.subr.mxu0 0.0
        %697 = vmatpush1.msra.mxu0 0.0
        %698 = vmatprep.subr.mxu0 0.0
        %699 = vmatpush1.msra.mxu0 0.0
        %700 = vmatprep.mubr.f32.mxu0 0.0
        %701 = vmatmul.mubr.f32.gmra.mrb[0].mxu0 %v634
        %v702 = vpop.f32.mrb[0].mxu0
        %v703 = vadd.f32 %v630, %v702
        %v704 = vpop.f32.mrb[0].mxu0
        %705 = vdwg.mxu0
        %v706 = vmax.f32 %v703, 0.0
        %v707 = vld [vmem:[%s7] sm:$0xff]
        %v708 = vld [vmem:[%s7 + $0x8] sm:$0xff]
        %v709 = vld [vmem:[%s8] sm:$0x1]
        %v711 = vlaneseq
        %v712 = vshrl.u32 %v711, 7
        %v713 = vsub.s32 0, %v712
        %v714 = vrot.slane %v709, %v713
        %vm716 = vcmask 130048
        %v718 = vsel %vm716, %v706, 0
        %720 = vmatprep.subr.mxu0 0.0
        %721 = vmatpush1.msra.mxu0 %v707
        %722 = vmatprep.subr.mxu0 0.0
        %723 = vmatpush1.msra.mxu0 %v708
        %724 = vmatprep.subr.mxu0 0.0
        %725 = vmatpush1.msra.mxu0 0.0
        %726 = vmatprep.subr.mxu0 0.0
        %727 = vmatpush1.msra.mxu0 0.0
        %728 = vmatprep.subr.mxu0 0.0
        %729 = vmatpush1.msra.mxu0 0.0
        %730 = vmatprep.subr.mxu0 0.0
        %731 = vmatpush1.msra.mxu0 0.0
        %732 = vmatprep.subr.mxu0 0.0
        %733 = vmatpush1.msra.mxu0 0.0
        %734 = vmatprep.subr.mxu0 0.0
        %735 = vmatpush1.msra.mxu0 0.0
        %736 = vmatprep.subr.mxu0 0.0
        %737 = vmatpush1.msra.mxu0 0.0
        %738 = vmatprep.subr.mxu0 0.0
        %739 = vmatpush1.msra.mxu0 0.0
        %740 = vmatprep.subr.mxu0 0.0
        %741 = vmatpush1.msra.mxu0 0.0
        %742 = vmatprep.subr.mxu0 0.0
        %743 = vmatpush1.msra.mxu0 0.0
        %744 = vmatprep.subr.mxu0 0.0
        %745 = vmatpush1.msra.mxu0 0.0
        %746 = vmatprep.subr.mxu0 0.0
        %747 = vmatpush1.msra.mxu0 0.0
        %748 = vmatprep.subr.mxu0 0.0
        %749 = vmatpush1.msra.mxu0 0.0
        %750 = vmatprep.subr.mxu0 0.0
        %751 = vmatpush1.msra.mxu0 0.0
        %752 = vmatprep.subr.mxu0 0.0
        %753 = vmatpush1.msra.mxu0 0.0
        %754 = vmatprep.subr.mxu0 0.0
        %755 = vmatpush1.msra.mxu0 0.0
        %756 = vmatprep.subr.mxu0 0.0
        %757 = vmatpush1.msra.mxu0 0.0
        %758 = vmatprep.subr.mxu0 0.0
        %759 = vmatpush1.msra.mxu0 0.0
        %760 = vmatprep.subr.mxu0 0.0
        %761 = vmatpush1.msra.mxu0 0.0
        %762 = vmatprep.subr.mxu0 0.0
        %763 = vmatpush1.msra.mxu0 0.0
        %764 = vmatprep.subr.mxu0 0.0
        %765 = vmatpush1.msra.mxu0 0.0
        %766 = vmatprep.subr.mxu0 0.0
        %767 = vmatpush1.msra.mxu0 0.0
        %768 = vmatprep.subr.mxu0 0.0
        %769 = vmatpush1.msra.mxu0 0.0
        %770 = vmatprep.subr.mxu0 0.0
        %771 = vmatpush1.msra.mxu0 0.0
        %772 = vmatprep.subr.mxu0 0.0
        %773 = vmatpush1.msra.mxu0 0.0
        %774 = vmatprep.subr.mxu0 0.0
        %775 = vmatpush1.msra.mxu0 0.0
        %776 = vmatprep.subr.mxu0 0.0
        %777 = vmatpush1.msra.mxu0 0.0
        %778 = vmatprep.subr.mxu0 0.0
        %779 = vmatpush1.msra.mxu0 0.0
        %780 = vmatprep.subr.mxu0 0.0
        %781 = vmatpush1.msra.mxu0 0.0
        %782 = vmatprep.subr.mxu0 0.0
        %783 = vmatpush1.msra.mxu0 0.0
        %784 = vmatprep.mubr.f32.mxu0 0.0
        %785 = vmatmul.mubr.f32.gmra.mrb[0].mxu0 %v718
        %v786 = vpop.f32.mrb[0].mxu0
        %v787 = vadd.f32 %v714, %v786
        %v788 = vpop.f32.mrb[0].mxu0
        %789 = vdwg.mxu0
        %v790 = vmax.f32 %v787, 0.0
        %v791 = vld [vmem:[%s9] sm:$0xff]
        %v792 = vld [vmem:[%s9 + $0x8] sm:$0xff]
        %v793 = vld [vmem:[%s9 + $0x10] sm:$0xff]
        %v794 = vld [vmem:[%s9 + $0x18] sm:$0xff]
        %v795 = vld [vmem:[%s10] sm:$0x1]
        %v797 = vlaneseq
        %v798 = vshrl.u32 %v797, 7
        %v799 = vsub.s32 0, %v798
        %v800 = vrot.slane %v795, %v799
        %v803 = vsel %vm632, %v790, 0
        %805 = vmatprep.subr.mxu0 0.0
        %806 = vmatpush1.msra.mxu0 %v791
        %807 = vmatprep.subr.mxu0 0.0
        %808 = vmatpush1.msra.mxu0 %v792
        %809 = vmatprep.subr.mxu0 0.0
        %810 = vmatpush1.msra.mxu0 %v793
        %811 = vmatprep.subr.mxu0 0.0
        %812 = vmatpush1.msra.mxu0 %v794
        %813 = vmatprep.subr.mxu0 0.0
        %814 = vmatpush1.msra.mxu0 0.0
        %815 = vmatprep.subr.mxu0 0.0
        %816 = vmatpush1.msra.mxu0 0.0
        %817 = vmatprep.subr.mxu0 0.0
        %818 = vmatpush1.msra.mxu0 0.0
        %819 = vmatprep.subr.mxu0 0.0
        %820 = vmatpush1.msra.mxu0 0.0
        %821 = vmatprep.subr.mxu0 0.0
        %822 = vmatpush1.msra.mxu0 0.0
        %823 = vmatprep.subr.mxu0 0.0
        %824 = vmatpush1.msra.mxu0 0.0
        %825 = vmatprep.subr.mxu0 0.0
        %826 = vmatpush1.msra.mxu0 0.0
        %827 = vmatprep.subr.mxu0 0.0
        %828 = vmatpush1.msra.mxu0 0.0
        %829 = vmatprep.subr.mxu0 0.0
        %830 = vmatpush1.msra.mxu0 0.0
        %831 = vmatprep.subr.mxu0 0.0
        %832 = vmatpush1.msra.mxu0 0.0
        %833 = vmatprep.subr.mxu0 0.0
        %834 = vmatpush1.msra.mxu0 0.0
        %835 = vmatprep.subr.mxu0 0.0
        %836 = vmatpush1.msra.mxu0 0.0
        %837 = vmatprep.subr.mxu0 0.0
        %838 = vmatpush1.msra.mxu0 0.0
        %839 = vmatprep.subr.mxu0 0.0
        %840 = vmatpush1.msra.mxu0 0.0
        %841 = vmatprep.subr.mxu0 0.0
        %842 = vmatpush1.msra.mxu0 0.0
        %843 = vmatprep.subr.mxu0 0.0
        %844 = vmatpush1.msra.mxu0 0.0
        %845 = vmatprep.subr.mxu0 0.0
        %846 = vmatpush1.msra.mxu0 0.0
        %847 = vmatprep.subr.mxu0 0.0
        %848 = vmatpush1.msra.mxu0 0.0
        %849 = vmatprep.subr.mxu0 0.0
        %850 = vmatpush1.msra.mxu0 0.0
        %851 = vmatprep.subr.mxu0 0.0
        %852 = vmatpush1.msra.mxu0 0.0
        %853 = vmatprep.subr.mxu0 0.0
        %854 = vmatpush1.msra.mxu0 0.0
        %855 = vmatprep.subr.mxu0 0.0
        %856 = vmatpush1.msra.mxu0 0.0
        %857 = vmatprep.subr.mxu0 0.0
        %858 = vmatpush1.msra.mxu0 0.0
        %859 = vmatprep.subr.mxu0 0.0
        %860 = vmatpush1.msra.mxu0 0.0
        %861 = vmatprep.subr.mxu0 0.0
        %862 = vmatpush1.msra.mxu0 0.0
        %863 = vmatprep.subr.mxu0 0.0
        %864 = vmatpush1.msra.mxu0 0.0
        %865 = vmatprep.subr.mxu0 0.0
        %866 = vmatpush1.msra.mxu0 0.0
        %867 = vmatprep.subr.mxu0 0.0
        %868 = vmatpush1.msra.mxu0 0.0
        %869 = vmatprep.mubr.f32.mxu0 0.0
        %870 = vmatmul.mubr.f32.gmra.mrb[0].mxu0 %v803
        %v871 = vpop.f32.mrb[0].mxu0
        %v872 = vadd.f32 %v800, %v871
        %v873 = vpop.f32.mrb[0].mxu0
        %874 = vdwg.mxu0
        %v875 = vmax.f32 %v872, 0.0
        %v876 = vld [vmem:[%s11] sm:$0xff]
        %v877 = vld [vmem:[%s11 + $0x8] sm:$0xff]
        %v878 = vld [vmem:[%s11 + $0x10] sm:$0xff]
        %v879 = vld [vmem:[%s11 + $0x18] sm:$0xff]
        %v880 = vld [vmem:[%s11 + $0x20] sm:$0xff]
        %v881 = vld [vmem:[%s11 + $0x28] sm:$0xff]
        %v882 = vld [vmem:[%s11 + $0x30] sm:$0xff]
        %v883 = vld [vmem:[%s11 + $0x38] sm:$0xff]
        %v884 = vld [vmem:[%s12] sm:$0x1]
        %v886 = vlaneseq
        %v887 = vshrl.u32 %v886, 7
        %v888 = vsub.s32 0, %v887
        %v889 = vrot.slane %v884, %v888
        %v892 = vsel %vm546, %v875, 0
        %894 = vmatprep.subr.mxu0 0.0
        %895 = vmatpush1.msra.mxu0 %v876
        %896 = vmatprep.subr.mxu0 0.0
        %897 = vmatpush1.msra.mxu0 %v877
        %898 = vmatprep.subr.mxu0 0.0
        %899 = vmatpush1.msra.mxu0 %v878
        %900 = vmatprep.subr.mxu0 0.0
        %901 = vmatpush1.msra.mxu0 %v879
        %902 = vmatprep.subr.mxu0 0.0
        %903 = vmatpush1.msra.mxu0 %v880
        %904 = vmatprep.subr.mxu0 0.0
        %905 = vmatpush1.msra.mxu0 %v881
        %906 = vmatprep.subr.mxu0 0.0
        %907 = vmatpush1.msra.mxu0 %v882
        %908 = vmatprep.subr.mxu0 0.0
        %909 = vmatpush1.msra.mxu0 %v883
        %910 = vmatprep.subr.mxu0 0.0
        %911 = vmatpush1.msra.mxu0 0.0
        %912 = vmatprep.subr.mxu0 0.0
        %913 = vmatpush1.msra.mxu0 0.0
        %914 = vmatprep.subr.mxu0 0.0
        %915 = vmatpush1.msra.mxu0 0.0
        %916 = vmatprep.subr.mxu0 0.0
        %917 = vmatpush1.msra.mxu0 0.0
        %918 = vmatprep.subr.mxu0 0.0
        %919 = vmatpush1.msra.mxu0 0.0
        %920 = vmatprep.subr.mxu0 0.0
        %921 = vmatpush1.msra.mxu0 0.0
        %922 = vmatprep.subr.mxu0 0.0
        %923 = vmatpush1.msra.mxu0 0.0
        %924 = vmatprep.subr.mxu0 0.0
        %925 = vmatpush1.msra.mxu0 0.0
        %926 = vmatprep.subr.mxu0 0.0
        %927 = vmatpush1.msra.mxu0 0.0
        %928 = vmatprep.subr.mxu0 0.0
        %929 = vmatpush1.msra.mxu0 0.0
        %930 = vmatprep.subr.mxu0 0.0
        %931 = vmatpush1.msra.mxu0 0.0
        %932 = vmatprep.subr.mxu0 0.0
        %933 = vmatpush1.msra.mxu0 0.0
        %934 = vmatprep.subr.mxu0 0.0
        %935 = vmatpush1.msra.mxu0 0.0
        %936 = vmatprep.subr.mxu0 0.0
        %937 = vmatpush1.msra.mxu0 0.0
        %938 = vmatprep.subr.mxu0 0.0
        %939 = vmatpush1.msra.mxu0 0.0
        %940 = vmatprep.subr.mxu0 0.0
        %941 = vmatpush1.msra.mxu0 0.0
        %942 = vmatprep.subr.mxu0 0.0
        %943 = vmatpush1.msra.mxu0 0.0
        %944 = vmatprep.subr.mxu0 0.0
        %945 = vmatpush1.msra.mxu0 0.0
        %946 = vmatprep.subr.mxu0 0.0
        %947 = vmatpush1.msra.mxu0 0.0
        %948 = vmatprep.subr.mxu0 0.0
        %949 = vmatpush1.msra.mxu0 0.0
        %950 = vmatprep.subr.mxu0 0.0
        %951 = vmatpush1.msra.mxu0 0.0
        %952 = vmatprep.subr.mxu0 0.0
        %953 = vmatpush1.msra.mxu0 0.0
        %954 = vmatprep.subr.mxu0 0.0
        %955 = vmatpush1.msra.mxu0 0.0
        %956 = vmatprep.subr.mxu0 0.0
        %957 = vmatpush1.msra.mxu0 0.0
        %958 = vmatprep.mubr.f32.mxu0 0.0
        %959 = vmatmul.mubr.f32.gmra.mrb[0].mxu0 %v892
        %v960 = vpop.f32.mrb[0].mxu0
        %v961 = vadd.f32 %v889, %v960
        %v962 = vpop.f32.mrb[0].mxu0
        %963 = vdwg.mxu0
        %v964 = vsub.f32 0.0, %v961
        %v965 = vmul.f32 %v964, 1.442695
        %v966 = vpow.pop %v965
        %v967 = vadd.f32 %v966, 1.0
        %v968 = vrcp.pop %v967
        %969 = vst [vmem:[%s431] sm:$0xff] %v968
        %s970 = sand.u32 %s313, 1
        %s971 = scalar_lea.sflag [#allocation3], %s970
        %s972 = sand.u32 %s313, 1
        %s973 = smul.addr %s972, 8
        %s974 = scalar_lea.vmem [#allocation2], %s973
        // Predicated region
        $region73: #{tpu_custom_call.1} parent=71 // pred_check
          %p975 = pneg %p323
        $region74: #{tpu_custom_call.1} parent=71 // pred_check_branch
          %977 = sbr.rel (%p975) target = $region76
        $region75: #{tpu_custom_call.1} parent=71 // pred_region
          %s979 = ssub.s32 128, 128
          %980 = vsyncadd %s971, %s979
          %s981 = smul.addr %s27, 128
          %s982 = scalar_lea.hbm %s13, %s981
          %s984 = sshll.u32 %s974, 4
          %s985 = int_to_ptr.vmem [resolvable:$true] %s984
          %987 = dma.vmem_to_hbm [thread:$0]  %s985, 128, %s982, %s971
        $region76: #{tpu_custom_call.1} parent=71 // pred_fallthru
          _
      $region72: #{tpu_custom_call.1} parent=5 // pred_fallthru
        _
      %p988 = scmp.le.s32.totalorder 2, %s22
      // Predicated region
      $region77: #{tpu_custom_call.1} parent=5 // pred_check
        %p989 = pneg %p988
      $region78: #{tpu_custom_call.1} parent=5 // pred_check_branch
        %991 = sbr.rel (%p989) target = $region80
      $region79: #{tpu_custom_call.1} parent=5 // pred_region
        %s992 = ssub.s32 %s22, 2
        // Predicated region
        $region81: #{tpu_custom_call.1} parent=79 // pred_check
          %p993 = pneg %p329
        $region82: #{tpu_custom_call.1} parent=79 // pred_check_branch
          %995 = sbr.rel (%p993) target = $region84
        $region83: #{tpu_custom_call.1} parent=79 // pred_region
          %s996 = sand.u32 %s314, 1
          %s997 = scalar_lea.sflag [#allocation3], %s996
          %s998 = sand.u32 %s314, 1
          %s999 = smul.addr %s998, 8
          %s1000 = scalar_lea.vmem [#allocation2], %s999
          %1001 = dma.done %s997, 128
        $region84: #{tpu_custom_call.1} parent=79 // pred_fallthru
          _
      $region80: #{tpu_custom_call.1} parent=5 // pred_fallthru
        _
    $region6: #{tpu_custom_call.1} parent=1 // loop_footer
      %s26 = sadd.s32 1, %s22
    $region7: #{tpu_custom_call.1} parent=1 // loop_footer_branch
      %21 = sbr.rel target = $region3
    $region8: #{tpu_custom_call.1} parent=1 // loop_exit
      _
    %1002 = vsyncpa [#allocation3], 1
    %s1003 = scalar_lea.sflag [#allocation3], 1
    %1004 = vsyncpa %s1003, 1

</llo_original>
